<compile_context>
chip_gen: v5e
topology: v5e:2x2
jax: 0.10.0
libtpu: 0.0.40
codegen_flags: <defaults>
</compile_context>

<pallas_src>
import functools

import jax
import jax.numpy as jnp
from jax import lax
from jax.experimental import pallas as pl
from jax.experimental.pallas import tpu as pltpu


def _pick_row_tile(n):
    """Largest multiple-of-8 row tile <= 512 that divides N; else full N."""
    for tr in (512, 256, 128, 64, 32, 16, 8):
        if tr <= n and n % tr == 0:
            return tr
    return n


def gsl_mask_kernel(adj_ref, keep_row_ref, keep_col_ref, out_ref):
    # adj_ref:      (1, TR, N)  adjacency row tile
    # keep_row_ref: (1, TR, 1)  keep flags for the rows in this tile (0/1)
    # keep_col_ref: (1, 1, N)   keep flags for all columns (0/1)
    # out_ref:      (1, TR, N)
    keep_r = keep_row_ref[0, :, :] > 0.5          # (TR, 1) bool
    keep_c = keep_col_ref[0, :, :] > 0.5          # (1, N)  bool
    mask = keep_r | keep_c                         # (TR, N) broadcast OR
    zero = jnp.zeros((), adj_ref.dtype)
    out_ref[0, :, :] = jnp.where(mask, adj_ref[0, :, :], zero)


def gsl_forward(adj, score, rate, *, row_tile=None):
    """adj: [B, N, N], score: [B, N, 1] (or [B, N]). Returns masked adj [B, N, N]."""
    B, N, _ = adj.shape
    k = int(rate * N)
    k = max(0, min(k, N))

    # --- hoisted top-k: tiny [B, N] work done in plain JAX ------------------
    score2d = jnp.reshape(score, (B, N)).astype(jnp.float32)
    keep = jnp.zeros((B, N), adj.dtype)
    if k > 0:
        _, idx = lax.top_k(score2d, k)                     # (B, k)
        keep = keep.at[jnp.arange(B)[:, None], idx].set(1)
    keep_row = keep[:, :, None]                            # (B, N, 1)
    keep_col = keep[:, None, :]                            # (B, 1, N)

    # --- row-tiled, lane-dense masked multiply ------------------------------
    TR = row_tile if row_tile is not None else _pick_row_tile(N)
    if N % TR != 0:
        TR = N
    grid = (B, N // TR)

    return pl.pallas_call(
        gsl_mask_kernel,
        out_shape=jax.ShapeDtypeStruct((B, N, N), adj.dtype),
        grid=grid,
        in_specs=[
            pl.BlockSpec((1, TR, N), lambda b, r: (b, r, 0)),   # adj row tile
            pl.BlockSpec((1, TR, 1), lambda b, r: (b, r, 0)),   # keep (rows)
            pl.BlockSpec((1, 1, N), lambda b, r: (b, 0, 0)),    # keep (cols)
        ],
        out_specs=pl.BlockSpec((1, TR, N), lambda b, r: (b, r, 0)),
        compiler_params=pltpu.CompilerParams(
            dimension_semantics=("parallel", "parallel"),
        ),
    )(adj, keep_row, keep_col)


def gsl_reference(adj, score, rate):
    """Pure-JAX reference mirroring the PyTorch module."""
    B, N, _ = adj.shape
    k = int(rate * N)
    k = max(0, min(k, N))
    score2d = jnp.reshape(score, (B, N))
    keep = jnp.zeros((B, N), adj.dtype)
    if k > 0:
        _, idx = lax.top_k(score2d, k)
        keep = keep.at[jnp.arange(B)[:, None], idx].set(1)
    mask = jnp.maximum(keep[:, :, None], keep[:, None, :])   # (B, N, N)
    return adj * mask


if __name__ == "__main__":
    key = jax.random.PRNGKey(0)
    k_adj, k_score = jax.random.split(key)

    B, N = 2, 128   # lane-dense small test shape (N multiple of 128)
    rate = 0.5

    adj = jax.random.uniform(k_adj, (B, N, N), dtype=jnp.float32)
    score = jax.random.normal(k_score, (B, N, 1), dtype=jnp.float32)

    out = gsl_forward(adj, score, rate)
    out = jax.block_until_ready(out)

    ref = gsl_reference(adj, score, rate)
    assert out.shape == (B, N, N)
    assert jnp.allclose(out, ref, atol=1e-6), "Pallas GSL output mismatch vs reference"

    print("KERNEL_OK")
</pallas_src>

<mosaic_0001>
module attributes {stable_mosaic.version = 11 : i64} {
  func.func @gsl_mask_kernel(%arg0: i32, %arg1: i32, %arg2: memref<1x128x128xf32, #tpu.memory_space<vmem>>, %arg3: memref<1x128x1xf32, #tpu.memory_space<vmem>>, %arg4: memref<1x1x128xf32, #tpu.memory_space<vmem>>, %arg5: memref<1x128x128xf32, #tpu.memory_space<vmem>>) attributes {dimension_semantics = [#tpu.dimension_semantics<parallel>, #tpu.dimension_semantics<parallel>], iteration_bounds = array<i64: 2, 1>, scalar_prefetch = 0 : i64, scratch_operands = 0 : i64, tpu.core_type = #tpu.core_type<tc>, window_params = [{transform_indices = @transform_0, window_bounds = array<i64: 1, 128, 128>}, {transform_indices = @transform_1, window_bounds = array<i64: 1, 128, 1>}, {transform_indices = @transform_2, window_bounds = array<i64: 1, 1, 128>}, {transform_indices = @transform_3, window_bounds = array<i64: 1, 128, 128>}]} {
    %c0 = arith.constant 0 : index
    %c0_0 = arith.constant 0 : index
    %c0_1 = arith.constant 0 : index
    %0 = vector.load %arg3[%c0, %c0_0, %c0_1] : memref<1x128x1xf32, #tpu.memory_space<vmem>>, vector<1x128x1xf32>
    %1 = vector.shape_cast %0 : vector<1x128x1xf32> to vector<128x1xf32>
    %cst = arith.constant 5.000000e-01 : f32
    %2 = vector.broadcast %cst : f32 to vector<128x1xf32>
    %3 = arith.cmpf ogt, %1, %2 : vector<128x1xf32>
    %c0_2 = arith.constant 0 : index
    %c0_3 = arith.constant 0 : index
    %c0_4 = arith.constant 0 : index
    %4 = vector.load %arg4[%c0_2, %c0_3, %c0_4] : memref<1x1x128xf32, #tpu.memory_space<vmem>>, vector<1x1x128xf32>
    %5 = vector.shape_cast %4 : vector<1x1x128xf32> to vector<1x128xf32>
    %cst_5 = arith.constant 5.000000e-01 : f32
    %6 = vector.broadcast %cst_5 : f32 to vector<1x128xf32>
    %7 = arith.cmpf ogt, %5, %6 : vector<1x128xf32>
    %8 = vector.broadcast %3 : vector<128x1xi1> to vector<128x128xi1>
    %9 = vector.broadcast %7 : vector<1x128xi1> to vector<128x128xi1>
    %10 = arith.ori %8, %9 : vector<128x128xi1>
    %c0_6 = arith.constant 0 : index
    %c0_7 = arith.constant 0 : index
    %c0_8 = arith.constant 0 : index
    %11 = vector.load %arg2[%c0_6, %c0_7, %c0_8] : memref<1x128x128xf32, #tpu.memory_space<vmem>>, vector<1x128x128xf32>
    %12 = vector.shape_cast %11 : vector<1x128x128xf32> to vector<128x128xf32>
    %cst_9 = arith.constant 0.000000e+00 : f32
    %13 = vector.broadcast %cst_9 : f32 to vector<128x128xf32>
    %14 = arith.select %10, %12, %13 : vector<128x128xi1>, vector<128x128xf32>
    %c0_10 = arith.constant 0 : index
    %c0_11 = arith.constant 0 : index
    %c0_12 = arith.constant 0 : index
    %15 = vector.load %arg5[%c0_10, %c0_11, %c0_12] : memref<1x128x128xf32, #tpu.memory_space<vmem>>, vector<1x128x128xf32>
    %16 = vector.shape_cast %15 : vector<1x128x128xf32> to vector<128x128xf32>
    %17 = vector.shape_cast %14 : vector<128x128xf32> to vector<1x128x128xf32>
    tpu.vector_store %arg5[%c0_10, %c0_11, %c0_12], %17 {strides = array<i32>} : memref<1x128x128xf32, #tpu.memory_space<vmem>>, vector<1x128x128xf32>,
    return
  }
  func.func @transform_0(%arg0: i32, %arg1: i32) -> (i32, i32, i32) {
    %c0_i32 = arith.constant 0 : i32
    %c0_i32_0 = arith.constant 0 : i32
    return %arg0, %arg1, %c0_i32 : i32, i32, i32
  }
  func.func @transform_1(%arg0: i32, %arg1: i32) -> (i32, i32, i32) {
    %c0_i32 = arith.constant 0 : i32
    %c0_i32_0 = arith.constant 0 : i32
    return %arg0, %arg1, %c0_i32 : i32, i32, i32
  }
  func.func @transform_2(%arg0: i32, %arg1: i32) -> (i32, i32, i32) {
    %c0_i32 = arith.constant 0 : i32
    %c0_i32_0 = arith.constant 0 : i32
    %c0_i32_1 = arith.constant 0 : i32
    return %arg0, %c0_i32, %c0_i32_0 : i32, i32, i32
  }
  func.func @transform_3(%arg0: i32, %arg1: i32) -> (i32, i32, i32) {
    %c0_i32 = arith.constant 0 : i32
    %c0_i32_0 = arith.constant 0 : i32
    return %arg0, %arg1, %c0_i32 : i32, i32, i32
  }
}

</mosaic_0001>

<llo_original>
// kernel: tpu_custom_call.1
$region0: #{tpu_custom_call.1}
  #allocation0 [shape = 'u32[]', space=smem, size = 0x4, offset = 0x4, fixed_abs, tag = 'smem constant byte address 0x4 - core index']
  #allocation1 [shape = 'u32[72,128]{1,0:T(1,128)}', space=vmem, size = 0x9000, scoped, tag = 'internal scratch']
  %s0 = inlined_call_operand.vmem [shape: f32[2,128,128], index: 0, kind: input, shape index: {}]
  %s1 = inlined_call_operand.vmem [shape: f32[2,128,1], index: 1, kind: input, shape index: {}]
  %s2 = inlined_call_operand.vmem [shape: f32[2,1,128], index: 2, kind: input, shape index: {}]
  %s3 = inlined_call_operand.hbm [shape: f32[2,128,128], index: 3, kind: output, shape index: {}]
  %s4 = sld [smem:[#allocation0]]
  $region45: #{tpu_custom_call.1} parent=0
    _
  %s6 = ssub.s32 1, %s4
  %s7 = scalar_select 0, %s6, %s4
  $region1: #{tpu_custom_call.1} parent=0
    #allocation2 [shape = 'u8[131072]{0}', space=vmem, size = 0x20000, scoped, tag = 'output window, operand 0']
    #allocation3 [shape = 's32[2]{0}', space=sflag, size = 0x8, scoped, tag = 'scoped memory for tpu_custom_call.1']
    %8 = vsyncpa [#allocation3], 0
    %s9 = scalar_lea.sflag [#allocation3], 1
    %10 = vsyncpa %s9, 0
    loop: start=0, step=1, limit=4
    $region2: #{tpu_custom_call.1} parent=1 // loop_pre_header
      _
    $region3: #{tpu_custom_call.1} parent=1 // loop_header
      %s12 = sphi 0, %s16
      %p13 = scmp.ge.s32.totalorder %s12, 4
      %s19 = sphi 0, %s31
      %s20 = sphi 0, %s27
      %s21 = sphi 0, %s19
      %s22 = sphi 0, %s20
      %s23 = sphi 0, %s21
      %s24 = sphi 0, %s22
      %s36 = sphi 0, %s38
      %s39 = sphi 0, %s36
      %s40 = sphi 0, %s39
      %s56 = sphi 0, %s40
      %s64 = sphi 0, %s66
      %s67 = sphi 0, %s64
      %s68 = sphi 0, %s67
      %s84 = sphi 0, %s68
      %s90 = sphi 0, %s92
      %s93 = sphi 0, %s90
      %s94 = sphi 0, %s93
      %s110 = sphi 0, %s94
      %s118 = sphi 0, %s120
      %s121 = sphi 0, %s118
      %s122 = sphi 0, %s121
      %s138 = sphi 0, %s122
    $region4: #{tpu_custom_call.1} parent=1 // loop_header_branch
      %15 = sbr.rel (%p13) target = $region8
    $region5: #{tpu_custom_call.1} parent=1 // loop_body
      %s17 = ssub.s32 %s12, 1
      %s18 = ssub.s32 %s12, 2
      %s25 = sadd.s32 1, %s20
      %p26 = scmp.ge.s32.totalorder %s25, 1
      %s27 = scalar_select %p26, 0, %s25
      %s28 = sadd.s32 1, %s19
      %s29 = scalar_select %p26, %s28, %s19
      %p30 = scmp.ge.s32.totalorder %s29, 2
      %s31 = scalar_select %p30, 0, %s29
      %s32 = ssub.s32 %s19, %s31
      %s33 = ssub.s32 %s20, %s27
      %s34 = sor.u32 %s32, %s33
      %p35 = scmp.eq.s32.totalorder %s34, 0
      %s37 = sadd.s32 %s36, 1
      %s38 = scalar_select %p35, %s36, %s37
      %p41 = pneg %p35
      %p42 = scmp.eq.s32.totalorder %s12, 1
      %p43 = por %p41, %p42
      %p44 = scmp.ne.s32.totalorder %s36, %s39
      %p45 = scmp.eq.s32.totalorder %s12, 0
      %p46 = por %p44, %p45
      %p47 = scmp.ne.s32.totalorder %s36, %s39
      %p48 = scmp.eq.s32.totalorder %s17, 1
      %p49 = por %p47, %p48
      %p50 = scmp.ne.s32.totalorder %s39, %s40
      %p51 = scmp.eq.s32.totalorder %s17, 0
      %p52 = por %p50, %p51
      %p53 = scmp.ne.s32.totalorder %s39, %s40
      %p54 = scmp.eq.s32.totalorder %s18, 1
      %p55 = por %p53, %p54
      %p57 = scmp.ne.s32.totalorder %s40, %s56
      %p58 = scmp.eq.s32.totalorder %s18, 0
      %p59 = por %p57, %p58
      %s60 = ssub.s32 %s19, %s31
      %s61 = ssub.s32 %s20, %s27
      %s62 = sor.u32 %s60, %s61
      %p63 = scmp.eq.s32.totalorder %s62, 0
      %s65 = sadd.s32 %s64, 1
      %s66 = scalar_select %p63, %s64, %s65
      %p69 = pneg %p63
      %p70 = scmp.eq.s32.totalorder %s12, 1
      %p71 = por %p69, %p70
      %p72 = scmp.ne.s32.totalorder %s64, %s67
      %p73 = scmp.eq.s32.totalorder %s12, 0
      %p74 = por %p72, %p73
      %p75 = scmp.ne.s32.totalorder %s64, %s67
      %p76 = scmp.eq.s32.totalorder %s17, 1
      %p77 = por %p75, %p76
      %p78 = scmp.ne.s32.totalorder %s67, %s68
      %p79 = scmp.eq.s32.totalorder %s17, 0
      %p80 = por %p78, %p79
      %p81 = scmp.ne.s32.totalorder %s67, %s68
      %p82 = scmp.eq.s32.totalorder %s18, 1
      %p83 = por %p81, %p82
      %p85 = scmp.ne.s32.totalorder %s68, %s84
      %p86 = scmp.eq.s32.totalorder %s18, 0
      %p87 = por %p85, %p86
      %s88 = ssub.s32 %s19, %s31
      %p89 = scmp.eq.s32.totalorder %s88, 0
      %s91 = sadd.s32 %s90, 1
      %s92 = scalar_select %p89, %s90, %s91
      %p95 = pneg %p89
      %p96 = scmp.eq.s32.totalorder %s12, 1
      %p97 = por %p95, %p96
      %p98 = scmp.ne.s32.totalorder %s90, %s93
      %p99 = scmp.eq.s32.totalorder %s12, 0
      %p100 = por %p98, %p99
      %p101 = scmp.ne.s32.totalorder %s90, %s93
      %p102 = scmp.eq.s32.totalorder %s17, 1
      %p103 = por %p101, %p102
      %p104 = scmp.ne.s32.totalorder %s93, %s94
      %p105 = scmp.eq.s32.totalorder %s17, 0
      %p106 = por %p104, %p105
      %p107 = scmp.ne.s32.totalorder %s93, %s94
      %p108 = scmp.eq.s32.totalorder %s18, 1
      %p109 = por %p107, %p108
      %p111 = scmp.ne.s32.totalorder %s94, %s110
      %p112 = scmp.eq.s32.totalorder %s18, 0
      %p113 = por %p111, %p112
      %s114 = ssub.s32 %s19, %s31
      %s115 = ssub.s32 %s20, %s27
      %s116 = sor.u32 %s114, %s115
      %p117 = scmp.eq.s32.totalorder %s116, 0
      %s119 = sadd.s32 %s118, 1
      %s120 = scalar_select %p117, %s118, %s119
      %p123 = pneg %p117
      %p124 = scmp.eq.s32.totalorder %s12, 1
      %p125 = por %p123, %p124
      %p126 = scmp.ne.s32.totalorder %s118, %s121
      %p127 = scmp.eq.s32.totalorder %s12, 0
      %p128 = por %p126, %p127
      %p129 = scmp.ne.s32.totalorder %s118, %s121
      %p130 = scmp.eq.s32.totalorder %s17, 1
      %p131 = por %p129, %p130
      %p132 = scmp.ne.s32.totalorder %s121, %s122
      %p133 = scmp.eq.s32.totalorder %s17, 0
      %p134 = por %p132, %p133
      %p135 = scmp.ne.s32.totalorder %s121, %s122
      %p136 = scmp.eq.s32.totalorder %s18, 1
      %p137 = por %p135, %p136
      %p139 = scmp.ne.s32.totalorder %s122, %s138
      %p140 = scmp.eq.s32.totalorder %s18, 0
      %p141 = por %p139, %p140
      %p142 = scmp.le.s32.totalorder 1, %s12
      %p143 = scmp.lt.s32.totalorder %s12, 3
      %p144 = pnand %p142, %p143
      %p145 = pneg %p144
      // Predicated region
      $region9: #{tpu_custom_call.1} parent=5 // pred_check
        _
      $region10: #{tpu_custom_call.1} parent=5 // pred_check_branch
        %147 = sbr.rel (%p144) target = $region12
      $region11: #{tpu_custom_call.1} parent=5 // pred_region
        %s148 = ssub.s32 %s12, 1
      $region12: #{tpu_custom_call.1} parent=5 // pred_fallthru
        _
      %p149 = scmp.lt.s32.totalorder %s12, 2
      // Predicated region
      $region13: #{tpu_custom_call.1} parent=5 // pred_check
        %p150 = pneg %p149
      $region14: #{tpu_custom_call.1} parent=5 // pred_check_branch
        %152 = sbr.rel (%p150) target = $region16
      $region15: #{tpu_custom_call.1} parent=5 // pred_region
        // Predicated region
        $region17: #{tpu_custom_call.1} parent=15 // pred_check
          %p153 = pneg %p46
        $region18: #{tpu_custom_call.1} parent=15 // pred_check_branch
          %155 = sbr.rel (%p153) target = $region20
        $region19: #{tpu_custom_call.1} parent=15 // pred_region
          %s156 = smul.u32 16, %s20
          %p157 = scmp.lt.s32.totalorder %s19, 1
          %s158 = scalar_select %p157, %s19, 1
          %p159 = scmp.lt.s32.totalorder %s156, 15
          %s160 = scalar_select %p159, %s156, 15
          %s161 = smul.addr %s158, 16
          %s162 = sadd.s32 %s160, %s161
          %s163 = smul.addr %s162, 8
          %s164 = scalar_lea.vmem %s0, %s163
          %s165 = smul.u32 16, %s20
        $region20: #{tpu_custom_call.1} parent=15 // pred_fallthru
          _
        // Predicated region
        $region21: #{tpu_custom_call.1} parent=15 // pred_check
          %p166 = pneg %p74
        $region22: #{tpu_custom_call.1} parent=15 // pred_check_branch
          %168 = sbr.rel (%p166) target = $region24
        $region23: #{tpu_custom_call.1} parent=15 // pred_region
          %s169 = smul.u32 16, %s20
          %p170 = scmp.lt.s32.totalorder %s19, 1
          %s171 = scalar_select %p170, %s19, 1
          %p172 = scmp.lt.s32.totalorder %s169, 15
          %s173 = scalar_select %p172, %s169, 15
          %s174 = smul.addr %s171, 16
          %s175 = sadd.s32 %s173, %s174
          %s176 = smul.addr %s175, 8
          %s177 = scalar_lea.vmem %s1, %s176
          %s178 = smul.u32 16, %s20
        $region24: #{tpu_custom_call.1} parent=15 // pred_fallthru
          _
        // Predicated region
        $region25: #{tpu_custom_call.1} parent=15 // pred_check
          %p179 = pneg %p100
        $region26: #{tpu_custom_call.1} parent=15 // pred_check_branch
          %181 = sbr.rel (%p179) target = $region28
        $region27: #{tpu_custom_call.1} parent=15 // pred_region
          %p182 = scmp.lt.s32.totalorder %s19, 1
          %s183 = scalar_select %p182, %s19, 1
          %s184 = scalar_lea.vmem %s2, %s183
        $region28: #{tpu_custom_call.1} parent=15 // pred_fallthru
          _
      $region16: #{tpu_custom_call.1} parent=5 // pred_fallthru
        _
      %p185 = scmp.le.s32.totalorder 1, %s12
      %p186 = scmp.lt.s32.totalorder %s12, 3
      %p187 = pnand %p185, %p186
      %p188 = pneg %p187
      // Predicated region
      $region29: #{tpu_custom_call.1} parent=5 // pred_check
        _
      $region30: #{tpu_custom_call.1} parent=5 // pred_check_branch
        %190 = sbr.rel (%p187) target = $region32
      $region31: #{tpu_custom_call.1} parent=5 // pred_region
        %s191 = ssub.s32 %s12, 1
        %s192 = smul.u32 16, %s22
        %p193 = scmp.lt.s32.totalorder %s21, 1
        %s194 = scalar_select %p193, %s21, 1
        %p195 = scmp.lt.s32.totalorder %s192, 15
        %s196 = scalar_select %p195, %s192, 15
        %s197 = smul.addr %s194, 16
        %s198 = sadd.s32 %s196, %s197
        %s199 = smul.addr %s198, 8
        %s200 = scalar_lea.vmem %s0, %s199
        %p201 = pneg %p52
        %p202 = pneg %p49
        %s203 = smul.u32 16, %s22
        %p204 = scmp.lt.s32.totalorder %s21, 1
        %s205 = scalar_select %p204, %s21, 1
        %p206 = scmp.lt.s32.totalorder %s203, 15
        %s207 = scalar_select %p206, %s203, 15
        %s208 = smul.addr %s205, 16
        %s209 = sadd.s32 %s207, %s208
        %s210 = smul.addr %s209, 8
        %s211 = scalar_lea.vmem %s1, %s210
        %p212 = pneg %p80
        %p213 = pneg %p77
        %p214 = scmp.lt.s32.totalorder %s21, 1
        %s215 = scalar_select %p214, %s21, 1
        %s216 = scalar_lea.vmem %s2, %s215
        %p217 = pneg %p106
        %p218 = pneg %p103
        %p219 = pneg %p134
        %p220 = pneg %p131
        %s221 = sand.u32 %s121, 1
        %s222 = scalar_lea.sflag [#allocation3], %s221
        %s223 = sand.u32 %s121, 1
        %s224 = smul.addr %s223, 128
        %s225 = scalar_lea.vmem [#allocation2], %s224
        %s226 = smul.u32 16, %s22
        %p227 = scmp.lt.s32.totalorder %s21, 1
        %s228 = scalar_select %p227, %s21, 1
        %p229 = scmp.lt.s32.totalorder %s226, 15
        %s230 = scalar_select %p229, %s226, 15
        %s231 = smul.addr %s228, 16
        %s232 = sadd.s32 %s230, %s231
        %s233 = smul.addr %s232, 8
        %s234 = scalar_lea.vmem %s0, %s233
        %s235 = smul.u32 16, %s22
        %s236 = smul.u32 16, %s22
        %p237 = scmp.lt.s32.totalorder %s21, 1
        %s238 = scalar_select %p237, %s21, 1
        %p239 = scmp.lt.s32.totalorder %s236, 15
        %s240 = scalar_select %p239, %s236, 15
        %s241 = smul.addr %s238, 16
        %s242 = sadd.s32 %s240, %s241
        %s243 = smul.addr %s242, 8
        %s244 = scalar_lea.vmem %s1, %s243
        %s245 = smul.u32 16, %s22
        %p246 = scmp.lt.s32.totalorder %s21, 1
        %s247 = scalar_select %p246, %s21, 1
        %s248 = scalar_lea.vmem %s2, %s247
        %s249 = smul.u32 16, %s22
        %v250 = vld [vmem:[%s244] sm:$0xff]
        %v251 = vld [vmem:[%s244 + $0x8] sm:$0xff]
        %v252 = vld [vmem:[%s244 + $0x10] sm:$0xff]
        %v253 = vld [vmem:[%s244 + $0x18] sm:$0xff]
        %v254 = vld [vmem:[%s244 + $0x20] sm:$0xff]
        %v255 = vld [vmem:[%s244 + $0x28] sm:$0xff]
        %v256 = vld [vmem:[%s244 + $0x30] sm:$0xff]
        %v257 = vld [vmem:[%s244 + $0x38] sm:$0xff]
        %v258 = vld [vmem:[%s244 + $0x40] sm:$0xff]
        %v259 = vld [vmem:[%s244 + $0x48] sm:$0xff]
        %v260 = vld [vmem:[%s244 + $0x50] sm:$0xff]
        %v261 = vld [vmem:[%s244 + $0x58] sm:$0xff]
        %v262 = vld [vmem:[%s244 + $0x60] sm:$0xff]
        %v263 = vld [vmem:[%s244 + $0x68] sm:$0xff]
        %v264 = vld [vmem:[%s244 + $0x70] sm:$0xff]
        %v265 = vld [vmem:[%s244 + $0x78] sm:$0xff]
        %vm266 = vcmp.gt.f32.partialorder %v250, 0.5
        %vm267 = vcmp.gt.f32.partialorder %v251, 0.5
        %vm268 = vcmp.gt.f32.partialorder %v252, 0.5
        %vm269 = vcmp.gt.f32.partialorder %v253, 0.5
        %vm270 = vcmp.gt.f32.partialorder %v254, 0.5
        %vm271 = vcmp.gt.f32.partialorder %v255, 0.5
        %vm272 = vcmp.gt.f32.partialorder %v256, 0.5
        %vm273 = vcmp.gt.f32.partialorder %v257, 0.5
        %vm274 = vcmp.gt.f32.partialorder %v258, 0.5
        %vm275 = vcmp.gt.f32.partialorder %v259, 0.5
        %vm276 = vcmp.gt.f32.partialorder %v260, 0.5
        %vm277 = vcmp.gt.f32.partialorder %v261, 0.5
        %vm278 = vcmp.gt.f32.partialorder %v262, 0.5
        %vm279 = vcmp.gt.f32.partialorder %v263, 0.5
        %vm280 = vcmp.gt.f32.partialorder %v264, 0.5
        %vm281 = vcmp.gt.f32.partialorder %v265, 0.5
        %v282 = vld [vmem:[%s248] sm:$0x1]
        %vm283 = vcmp.gt.f32.partialorder %v282, 0.5
        %v284 = vsel %vm266, 1, 0
        %v285 = vsel %vm267, 1, 0
        %v286 = vsel %vm268, 1, 0
        %v287 = vsel %vm269, 1, 0
        %v288 = vsel %vm270, 1, 0
        %v289 = vsel %vm271, 1, 0
        %v290 = vsel %vm272, 1, 0
        %v291 = vsel %vm273, 1, 0
        %v292 = vsel %vm274, 1, 0
        %v293 = vsel %vm275, 1, 0
        %v294 = vsel %vm276, 1, 0
        %v295 = vsel %vm277, 1, 0
        %v296 = vsel %vm278, 1, 0
        %v297 = vsel %vm279, 1, 0
        %v298 = vsel %vm280, 1, 0
        %v299 = vsel %vm281, 1, 0
        %300 = vset.pattern.permute.xlu0 0
        %301 = vperm.xlu0 %300, %v284
        %v302 = vpop.permute.xlu0 %301
        %303 = vset.pattern.permute.xlu0 0
        %304 = vperm.xlu0 %303, %v285
        %v305 = vpop.permute.xlu0 %304
        %306 = vset.pattern.permute.xlu0 0
        %307 = vperm.xlu0 %306, %v286
        %v308 = vpop.permute.xlu0 %307
        %309 = vset.pattern.permute.xlu0 0
        %310 = vperm.xlu0 %309, %v287
        %v311 = vpop.permute.xlu0 %310
        %312 = vset.pattern.permute.xlu0 0
        %313 = vperm.xlu0 %312, %v288
        %v314 = vpop.permute.xlu0 %313
        %315 = vset.pattern.permute.xlu0 0
        %316 = vperm.xlu0 %315, %v289
        %v317 = vpop.permute.xlu0 %316
        %318 = vset.pattern.permute.xlu0 0
        %319 = vperm.xlu0 %318, %v290
        %v320 = vpop.permute.xlu0 %319
        %321 = vset.pattern.permute.xlu0 0
        %322 = vperm.xlu0 %321, %v291
        %v323 = vpop.permute.xlu0 %322
        %324 = vset.pattern.permute.xlu0 0
        %325 = vperm.xlu0 %324, %v292
        %v326 = vpop.permute.xlu0 %325
        %327 = vset.pattern.permute.xlu0 0
        %328 = vperm.xlu0 %327, %v293
        %v329 = vpop.permute.xlu0 %328
        %330 = vset.pattern.permute.xlu0 0
        %331 = vperm.xlu0 %330, %v294
        %v332 = vpop.permute.xlu0 %331
        %333 = vset.pattern.permute.xlu0 0
        %334 = vperm.xlu0 %333, %v295
        %v335 = vpop.permute.xlu0 %334
        %336 = vset.pattern.permute.xlu0 0
        %337 = vperm.xlu0 %336, %v296
        %v338 = vpop.permute.xlu0 %337
        %339 = vset.pattern.permute.xlu0 0
        %340 = vperm.xlu0 %339, %v297
        %v341 = vpop.permute.xlu0 %340
        %342 = vset.pattern.permute.xlu0 0
        %343 = vperm.xlu0 %342, %v298
        %v344 = vpop.permute.xlu0 %343
        %345 = vset.pattern.permute.xlu0 0
        %346 = vperm.xlu0 %345, %v299
        %v347 = vpop.permute.xlu0 %346
        %vm348 = vcmp.eq.s32.totalorder %v302, 1
        %vm349 = vcmp.eq.s32.totalorder %v305, 1
        %vm350 = vcmp.eq.s32.totalorder %v308, 1
        %vm351 = vcmp.eq.s32.totalorder %v311, 1
        %vm352 = vcmp.eq.s32.totalorder %v314, 1
        %vm353 = vcmp.eq.s32.totalorder %v317, 1
        %vm354 = vcmp.eq.s32.totalorder %v320, 1
        %vm355 = vcmp.eq.s32.totalorder %v323, 1
        %vm356 = vcmp.eq.s32.totalorder %v326, 1
        %vm357 = vcmp.eq.s32.totalorder %v329, 1
        %vm358 = vcmp.eq.s32.totalorder %v332, 1
        %vm359 = vcmp.eq.s32.totalorder %v335, 1
        %vm360 = vcmp.eq.s32.totalorder %v338, 1
        %vm361 = vcmp.eq.s32.totalorder %v341, 1
        %vm362 = vcmp.eq.s32.totalorder %v344, 1
        %vm363 = vcmp.eq.s32.totalorder %v347, 1
        %v364 = vsel %vm283, 1, 0
        %v365 = vperm.slane %v364, 0
        %vm366 = vcmp.eq.s32.totalorder %v365, 1
        %vm367 = vmor %vm348, %vm366
        %vm368 = vmor %vm349, %vm366
        %vm369 = vmor %vm350, %vm366
        %vm370 = vmor %vm351, %vm366
        %vm371 = vmor %vm352, %vm366
        %vm372 = vmor %vm353, %vm366
        %vm373 = vmor %vm354, %vm366
        %vm374 = vmor %vm355, %vm366
        %vm375 = vmor %vm356, %vm366
        %vm376 = vmor %vm357, %vm366
        %vm377 = vmor %vm358, %vm366
        %vm378 = vmor %vm359, %vm366
        %vm379 = vmor %vm360, %vm366
        %vm380 = vmor %vm361, %vm366
        %vm381 = vmor %vm362, %vm366
        %vm382 = vmor %vm363, %vm366
        %v383 = vld [vmem:[%s234] sm:$0xff]
        %v384 = vld [vmem:[%s234 + $0x8] sm:$0xff]
        %v385 = vld [vmem:[%s234 + $0x10] sm:$0xff]
        %v386 = vld [vmem:[%s234 + $0x18] sm:$0xff]
        %v387 = vld [vmem:[%s234 + $0x20] sm:$0xff]
        %v388 = vld [vmem:[%s234 + $0x28] sm:$0xff]
        %v389 = vld [vmem:[%s234 + $0x30] sm:$0xff]
        %v390 = vld [vmem:[%s234 + $0x38] sm:$0xff]
        %v391 = vld [vmem:[%s234 + $0x40] sm:$0xff]
        %v392 = vld [vmem:[%s234 + $0x48] sm:$0xff]
        %v393 = vld [vmem:[%s234 + $0x50] sm:$0xff]
        %v394 = vld [vmem:[%s234 + $0x58] sm:$0xff]
        %v395 = vld [vmem:[%s234 + $0x60] sm:$0xff]
        %v396 = vld [vmem:[%s234 + $0x68] sm:$0xff]
        %v397 = vld [vmem:[%s234 + $0x70] sm:$0xff]
        %v398 = vld [vmem:[%s234 + $0x78] sm:$0xff]
        %v399 = vsel %vm367, %v383, 0.0
        %v400 = vsel %vm368, %v384, 0.0
        %v401 = vsel %vm369, %v385, 0.0
        %v402 = vsel %vm370, %v386, 0.0
        %v403 = vsel %vm371, %v387, 0.0
        %v404 = vsel %vm372, %v388, 0.0
        %v405 = vsel %vm373, %v389, 0.0
        %v406 = vsel %vm374, %v390, 0.0
        %v407 = vsel %vm375, %v391, 0.0
        %v408 = vsel %vm376, %v392, 0.0
        %v409 = vsel %vm377, %v393, 0.0
        %v410 = vsel %vm378, %v394, 0.0
        %v411 = vsel %vm379, %v395, 0.0
        %v412 = vsel %vm380, %v396, 0.0
        %v413 = vsel %vm381, %v397, 0.0
        %v414 = vsel %vm382, %v398, 0.0
        %415 = vst [vmem:[%s225] sm:$0xff] %v399
        %416 = vst [vmem:[%s225 + $0x8] sm:$0xff] %v400
        %417 = vst [vmem:[%s225 + $0x10] sm:$0xff] %v401
        %418 = vst [vmem:[%s225 + $0x18] sm:$0xff] %v402
        %419 = vst [vmem:[%s225 + $0x20] sm:$0xff] %v403
        %420 = vst [vmem:[%s225 + $0x28] sm:$0xff] %v404
        %421 = vst [vmem:[%s225 + $0x30] sm:$0xff] %v405
        %422 = vst [vmem:[%s225 + $0x38] sm:$0xff] %v406
        %423 = vst [vmem:[%s225 + $0x40] sm:$0xff] %v407
        %424 = vst [vmem:[%s225 + $0x48] sm:$0xff] %v408
        %425 = vst [vmem:[%s225 + $0x50] sm:$0xff] %v409
        %426 = vst [vmem:[%s225 + $0x58] sm:$0xff] %v410
        %427 = vst [vmem:[%s225 + $0x60] sm:$0xff] %v411
        %428 = vst [vmem:[%s225 + $0x68] sm:$0xff] %v412
        %429 = vst [vmem:[%s225 + $0x70] sm:$0xff] %v413
        %430 = vst [vmem:[%s225 + $0x78] sm:$0xff] %v414
        %s431 = sand.u32 %s121, 1
        %s432 = scalar_lea.sflag [#allocation3], %s431
        %s433 = sand.u32 %s121, 1
        %s434 = smul.addr %s433, 128
        %s435 = scalar_lea.vmem [#allocation2], %s434
        // Predicated region
        $region33: #{tpu_custom_call.1} parent=31 // pred_check
          %p436 = pneg %p131
        $region34: #{tpu_custom_call.1} parent=31 // pred_check_branch
          %438 = sbr.rel (%p436) target = $region36
        $region35: #{tpu_custom_call.1} parent=31 // pred_region
          %s439 = smul.u32 16, %s22
          %441 = vsyncadd %s432, 0
          %s442 = smul.addr %s21, 16
          %s443 = sadd.s32 %s439, %s442
          %s444 = smul.addr %s443, 8
          %s445 = scalar_lea.hbm %s3, %s444
          %s446 = sshll.u32 %s435, 4
          %s447 = int_to_ptr.vmem [resolvable:$true] %s446
          %s448 = sshll.u32 %s445, 4
          %s449 = int_to_ptr.hbm [resolvable:$true] %s448
          %454 = dma.vmem_to_hbm [thread:$0]  %s447, 2048, %s449, %s432, 128, 128, 8
        $region36: #{tpu_custom_call.1} parent=31 // pred_fallthru
          _
      $region32: #{tpu_custom_call.1} parent=5 // pred_fallthru
        _
      %p455 = scmp.le.s32.totalorder 2, %s12
      // Predicated region
      $region37: #{tpu_custom_call.1} parent=5 // pred_check
        %p456 = pneg %p455
      $region38: #{tpu_custom_call.1} parent=5 // pred_check_branch
        %458 = sbr.rel (%p456) target = $region40
      $region39: #{tpu_custom_call.1} parent=5 // pred_region
        %s459 = ssub.s32 %s12, 2
        // Predicated region
        $region41: #{tpu_custom_call.1} parent=39 // pred_check
          %p460 = pneg %p137
        $region42: #{tpu_custom_call.1} parent=39 // pred_check_branch
          %462 = sbr.rel (%p460) target = $region44
        $region43: #{tpu_custom_call.1} parent=39 // pred_region
          %s463 = sand.u32 %s122, 1
          %s464 = scalar_lea.sflag [#allocation3], %s463
          %s465 = sand.u32 %s122, 1
          %s466 = smul.addr %s465, 128
          %s467 = scalar_lea.vmem [#allocation2], %s466
          %469 = dma.done %s464, 2048
        $region44: #{tpu_custom_call.1} parent=39 // pred_fallthru
          _
      $region40: #{tpu_custom_call.1} parent=5 // pred_fallthru
        _
    $region6: #{tpu_custom_call.1} parent=1 // loop_footer
      %s16 = sadd.s32 1, %s12
    $region7: #{tpu_custom_call.1} parent=1 // loop_footer_branch
      %11 = sbr.rel target = $region3
    $region8: #{tpu_custom_call.1} parent=1 // loop_exit
      _
    %470 = vsyncpa [#allocation3], 1
    %s471 = scalar_lea.sflag [#allocation3], 1
    %472 = vsyncpa %s471, 1

</llo_original>
